<compile_context>
chip_gen: v6e
topology: v6e:2x2x1
jax: 0.10.0
libtpu: 0.0.40
codegen_flags: <defaults>
</compile_context>

<pallas_src>
import jax
import jax.numpy as jnp
from jax import lax
from jax.experimental import pallas as pl
from jax.experimental.pallas import tpu as pltpu


def _toeplitz_conv_weights(w, out_w):
    """Expand HWIO 3x3 weights into per-dy Toeplitz matrices.

    w: (3, 3, Cin, Cout)  ->  (3, Cin*(out_w+2), Cout*out_w) with
      big[dy, ci*(out_w+2) + w_in, co*out_w + w_out] = w[dy, w_in - w_out, ci, co]
    for 0 <= w_in - w_out < 3, else 0.  Built once in plain JAX (tiny).
    """
    kh, kw, cin, cout = w.shape
    wp = out_w + 2
    w_in = jnp.arange(wp)[:, None]          # (Wp, 1)
    w_out = jnp.arange(out_w)[None, :]      # (1, W)
    dx = w_in - w_out                       # (Wp, W)
    valid = (dx >= 0) & (dx < kw)
    dxc = jnp.clip(dx, 0, kw - 1)
    g = w[:, dxc]                           # (3, Wp, W, Cin, Cout)
    g = jnp.where(valid[None, :, :, None, None], g, jnp.zeros((), w.dtype))
    g = jnp.transpose(g, (0, 3, 1, 4, 2))   # (3, Cin, Wp, Cout, W)
    return g.reshape(kh, cin * wp, cout * out_w)


def _double_conv_kernel(x_ref, w1_ref, w2_ref, o_ref, pad1_ref, pad2_ref):
    # x_ref:    (1, Cin, H, W)        one batch element, native NCHW
    # w1_ref:   (3, Cin*(W+2),  Cmid*W)   Toeplitz-expanded conv1 weights
    # w2_ref:   (3, Cmid*(W+2), Cout*W)   Toeplitz-expanded conv2 weights
    # o_ref:    (1, Cout, H, W)       native NCHW output
    # pad1_ref: (H+2, Cin*(W+2))  f32 VMEM scratch (padded conv1 input)
    # pad2_ref: (H+2, Cmid*(W+2)) f32 VMEM scratch (padded conv2 input)
    _, cin, H, W = x_ref.shape
    _, cout, _, _ = o_ref.shape
    Wp = W + 2
    cmid = w1_ref.shape[2] // W

    # ---- pad conv1 input in VMEM: memset borders, write interior per channel ----
    pad1_ref[...] = jnp.zeros_like(pad1_ref)
    for ci in range(cin):
        pad1_ref[1:H + 1, ci * Wp + 1: ci * Wp + 1 + W] = x_ref[0, ci]

    # ---- conv1: 3 Toeplitz matmuls (one per dy), f32 accumulation, ReLU ----
    acc1 = jnp.zeros((H, cmid * W), jnp.float32)
    for dy in range(3):
        acc1 = acc1 + jnp.dot(pad1_ref[dy:dy + H, :], w1_ref[dy],
                              preferred_element_type=jnp.float32)
    h1 = jnp.maximum(acc1, 0.0)          # (H, Cmid*W): channel-major row layout

    # ---- pad conv2 input: intermediate never leaves VMEM ----
    pad2_ref[...] = jnp.zeros_like(pad2_ref)
    for cm in range(cmid):
        pad2_ref[1:H + 1, cm * Wp + 1: cm * Wp + 1 + W] = h1[:, cm * W: cm * W + W]

    # ---- conv2: 3 Toeplitz matmuls, f32 accumulation, ReLU ----
    acc2 = jnp.zeros((H, cout * W), jnp.float32)
    for dy in range(3):
        acc2 = acc2 + jnp.dot(pad2_ref[dy:dy + H, :], w2_ref[dy],
                              preferred_element_type=jnp.float32)
    y = jnp.maximum(acc2, 0.0)           # (H, Cout*W)

    # ---- write NCHW output, one (H, W) slab per output channel ----
    for co in range(cout):
        o_ref[0, co] = y[:, co * W: co * W + W].astype(o_ref.dtype)


@jax.jit
def double_conv(x_nchw, w1, w2):
    """Pallas implementation of DoubleConv.forward.

    x_nchw: (N, Cin, H, W) f32
    w1: (3, 3, Cin, Cmid) HWIO, w2: (3, 3, Cmid, Cout) HWIO
    returns: (N, Cout, H, W)  (PyTorch NCHW convention)
    """
    N, Cin, H, W = x_nchw.shape
    Cmid = w1.shape[-1]
    Cout = w2.shape[-1]
    Hp, Wp = H + 2, W + 2

    w1big = _toeplitz_conv_weights(w1, W)   # (3, Cin*Wp,  Cmid*W)
    w2big = _toeplitz_conv_weights(w2, W)   # (3, Cmid*Wp, Cout*W)

    return pl.pallas_call(
        _double_conv_kernel,
        out_shape=jax.ShapeDtypeStruct((N, Cout, H, W), x_nchw.dtype),
        grid_spec=pltpu.PrefetchScalarGridSpec(
            num_scalar_prefetch=0,
            grid=(N,),
            in_specs=[
                pl.BlockSpec((1, Cin, H, W), lambda b: (b, 0, 0, 0)),
                pl.BlockSpec((3, Cin * Wp, Cmid * W), lambda b: (0, 0, 0)),
                pl.BlockSpec((3, Cmid * Wp, Cout * W), lambda b: (0, 0, 0)),
            ],
            out_specs=pl.BlockSpec((1, Cout, H, W), lambda b: (b, 0, 0, 0)),
            scratch_shapes=[
                pltpu.VMEM((Hp, Cin * Wp), jnp.float32),
                pltpu.VMEM((Hp, Cmid * Wp), jnp.float32),
            ],
        ),
        compiler_params=pltpu.CompilerParams(
            dimension_semantics=("parallel",),
        ),
    )(x_nchw, w1big, w2big)


def _reference_double_conv(x_nchw, w1, w2):
    """Pure-JAX reference (lax.conv) for correctness checking."""
    def conv(x, w):
        w_oihw = jnp.transpose(w, (3, 2, 0, 1))
        return lax.conv_general_dilated(
            x, w_oihw, window_strides=(1, 1), padding="SAME",
            dimension_numbers=("NCHW", "OIHW", "NCHW"))
    h = jnp.maximum(conv(x_nchw, w1), 0.0)
    return jnp.maximum(conv(h, w2), 0.0)


if __name__ == "__main__":
    key = jax.random.PRNGKey(0)
    k_x, k_w1, k_w2 = jax.random.split(key, 3)

    # Small shapes consistent with the module: DoubleConv(in=4, out=8)
    N, Cin, H, W = 2, 4, 16, 16
    Cmid = 8   # mid_channels defaults to out_channels
    Cout = 8

    x = jax.random.normal(k_x, (N, Cin, H, W), dtype=jnp.float32)
    # Kaiming-style init, no bias (matches nn.Conv2d(bias=False)).
    w1 = jax.random.normal(k_w1, (3, 3, Cin, Cmid), dtype=jnp.float32) * (2.0 / (9 * Cin)) ** 0.5
    w2 = jax.random.normal(k_w2, (3, 3, Cmid, Cout), dtype=jnp.float32) * (2.0 / (9 * Cmid)) ** 0.5

    out = jax.block_until_ready(double_conv(x, w1, w2))
    ref = jax.block_until_ready(_reference_double_conv(x, w1, w2))

    assert out.shape == (N, Cout, H, W)
    assert jnp.allclose(out, ref, atol=1e-4, rtol=1e-4), "mismatch vs JAX reference"

    print("KERNEL_OK")
</pallas_src>

<mosaic_0001>
module attributes {stable_mosaic.version = 11 : i64} {
  func.func @_double_conv_kernel(%arg0: i32, %arg1: memref<1x4x16x16xf32, #tpu.memory_space<vmem>>, %arg2: memref<3x72x128xf32, #tpu.memory_space<vmem>>, %arg3: memref<3x144x128xf32, #tpu.memory_space<vmem>>, %arg4: memref<1x8x16x16xf32, #tpu.memory_space<vmem>>, %arg5: memref<18x72xf32, #tpu.memory_space<vmem>>, %arg6: memref<18x144xf32, #tpu.memory_space<vmem>>) attributes {dimension_semantics = [#tpu.dimension_semantics<parallel>], iteration_bounds = array<i64: 2>, scalar_prefetch = 0 : i64, scratch_operands = 2 : i64, tpu.core_type = #tpu.core_type<tc>, window_params = [{transform_indices = @transform_0, window_bounds = array<i64: 1, 4, 16, 16>}, {pipeline_mode = #tpu.pipeline_mode<synchronous>, transform_indices = @transform_1, window_bounds = array<i64: 3, 72, 128>}, {pipeline_mode = #tpu.pipeline_mode<synchronous>, transform_indices = @transform_2, window_bounds = array<i64: 3, 144, 128>}, {transform_indices = @transform_3, window_bounds = array<i64: 1, 8, 16, 16>}]} {
    %cst = arith.constant 0.000000e+00 : f32
    %0 = vector.broadcast %cst : f32 to vector<18x72xf32>
    %c0 = arith.constant 0 : index
    %c0_0 = arith.constant 0 : index
    %1 = vector.load %arg5[%c0, %c0_0] : memref<18x72xf32, #tpu.memory_space<vmem>>, vector<18x72xf32>
    tpu.vector_store %arg5[%c0, %c0_0], %0 {strides = array<i32>} : memref<18x72xf32, #tpu.memory_space<vmem>>, vector<18x72xf32>,
    %c0_1 = arith.constant 0 : index
    %c0_2 = arith.constant 0 : index
    %c0_3 = arith.constant 0 : index
    %c0_4 = arith.constant 0 : index
    %2 = vector.load %arg1[%c0_1, %c0_2, %c0_3, %c0_4] : memref<1x4x16x16xf32, #tpu.memory_space<vmem>>, vector<1x1x16x16xf32>
    %3 = vector.shape_cast %2 : vector<1x1x16x16xf32> to vector<16x16xf32>
    %c1 = arith.constant 1 : index
    %c1_5 = arith.constant 1 : index
    %4 = vector.load %arg5[%c1, %c1_5] : memref<18x72xf32, #tpu.memory_space<vmem>>, vector<16x16xf32>
    tpu.vector_store %arg5[%c1, %c1_5], %3 {strides = array<i32>} : memref<18x72xf32, #tpu.memory_space<vmem>>, vector<16x16xf32>,
    %c0_6 = arith.constant 0 : index
    %c1_7 = arith.constant 1 : index
    %c0_8 = arith.constant 0 : index
    %c0_9 = arith.constant 0 : index
    %5 = vector.load %arg1[%c0_6, %c1_7, %c0_8, %c0_9] : memref<1x4x16x16xf32, #tpu.memory_space<vmem>>, vector<1x1x16x16xf32>
    %6 = vector.shape_cast %5 : vector<1x1x16x16xf32> to vector<16x16xf32>
    %c1_10 = arith.constant 1 : index
    %c19 = arith.constant 19 : index
    %7 = vector.load %arg5[%c1_10, %c19] : memref<18x72xf32, #tpu.memory_space<vmem>>, vector<16x16xf32>
    tpu.vector_store %arg5[%c1_10, %c19], %6 {strides = array<i32>} : memref<18x72xf32, #tpu.memory_space<vmem>>, vector<16x16xf32>,
    %c0_11 = arith.constant 0 : index
    %c2 = arith.constant 2 : index
    %c0_12 = arith.constant 0 : index
    %c0_13 = arith.constant 0 : index
    %8 = vector.load %arg1[%c0_11, %c2, %c0_12, %c0_13] : memref<1x4x16x16xf32, #tpu.memory_space<vmem>>, vector<1x1x16x16xf32>
    %9 = vector.shape_cast %8 : vector<1x1x16x16xf32> to vector<16x16xf32>
    %c1_14 = arith.constant 1 : index
    %c37 = arith.constant 37 : index
    %10 = vector.load %arg5[%c1_14, %c37] : memref<18x72xf32, #tpu.memory_space<vmem>>, vector<16x16xf32>
    tpu.vector_store %arg5[%c1_14, %c37], %9 {strides = array<i32>} : memref<18x72xf32, #tpu.memory_space<vmem>>, vector<16x16xf32>,
    %c0_15 = arith.constant 0 : index
    %c3 = arith.constant 3 : index
    %c0_16 = arith.constant 0 : index
    %c0_17 = arith.constant 0 : index
    %11 = vector.load %arg1[%c0_15, %c3, %c0_16, %c0_17] : memref<1x4x16x16xf32, #tpu.memory_space<vmem>>, vector<1x1x16x16xf32>
    %12 = vector.shape_cast %11 : vector<1x1x16x16xf32> to vector<16x16xf32>
    %c1_18 = arith.constant 1 : index
    %c55 = arith.constant 55 : index
    %13 = vector.load %arg5[%c1_18, %c55] : memref<18x72xf32, #tpu.memory_space<vmem>>, vector<16x16xf32>
    tpu.vector_store %arg5[%c1_18, %c55], %12 {strides = array<i32>} : memref<18x72xf32, #tpu.memory_space<vmem>>, vector<16x16xf32>,
    %cst_19 = arith.constant 0.000000e+00 : f32
    %14 = vector.broadcast %cst_19 : f32 to vector<16x128xf32>
    %c0_20 = arith.constant 0 : index
    %c0_21 = arith.constant 0 : index
    %15 = vector.load %arg5[%c0_20, %c0_21] : memref<18x72xf32, #tpu.memory_space<vmem>>, vector<16x72xf32>
    %c0_22 = arith.constant 0 : index
    %c0_23 = arith.constant 0 : index
    %c0_24 = arith.constant 0 : index
    %16 = vector.load %arg2[%c0_22, %c0_23, %c0_24] : memref<3x72x128xf32, #tpu.memory_space<vmem>>, vector<1x72x128xf32>
    %17 = vector.shape_cast %16 : vector<1x72x128xf32> to vector<72x128xf32>
    %cst_25 = arith.constant dense<0.000000e+00> : vector<16x128xf32>
    %18 = tpu.matmul %15, %17, %cst_25 {dimension_numbers = #tpu.dot_dimension_numbers<[1], [0], [0], [1], [0, 0, 1, 1], [], []>} : vector<16x72xf32>, vector<72x128xf32>, vector<16x128xf32> -> vector<16x128xf32>
    %19 = arith.addf %14, %18 : vector<16x128xf32>
    %c1_26 = arith.constant 1 : index
    %c0_27 = arith.constant 0 : index
    %20 = vector.load %arg5[%c1_26, %c0_27] : memref<18x72xf32, #tpu.memory_space<vmem>>, vector<16x72xf32>
    %c1_28 = arith.constant 1 : index
    %c0_29 = arith.constant 0 : index
    %c0_30 = arith.constant 0 : index
    %21 = vector.load %arg2[%c1_28, %c0_29, %c0_30] : memref<3x72x128xf32, #tpu.memory_space<vmem>>, vector<1x72x128xf32>
    %22 = vector.shape_cast %21 : vector<1x72x128xf32> to vector<72x128xf32>
    %cst_31 = arith.constant dense<0.000000e+00> : vector<16x128xf32>
    %23 = tpu.matmul %20, %22, %cst_31 {dimension_numbers = #tpu.dot_dimension_numbers<[1], [0], [0], [1], [0, 0, 1, 1], [], []>} : vector<16x72xf32>, vector<72x128xf32>, vector<16x128xf32> -> vector<16x128xf32>
    %24 = arith.addf %19, %23 : vector<16x128xf32>
    %c2_32 = arith.constant 2 : index
    %c0_33 = arith.constant 0 : index
    %25 = vector.load %arg5[%c2_32, %c0_33] : memref<18x72xf32, #tpu.memory_space<vmem>>, vector<16x72xf32>
    %c2_34 = arith.constant 2 : index
    %c0_35 = arith.constant 0 : index
    %c0_36 = arith.constant 0 : index
    %26 = vector.load %arg2[%c2_34, %c0_35, %c0_36] : memref<3x72x128xf32, #tpu.memory_space<vmem>>, vector<1x72x128xf32>
    %27 = vector.shape_cast %26 : vector<1x72x128xf32> to vector<72x128xf32>
    %cst_37 = arith.constant dense<0.000000e+00> : vector<16x128xf32>
    %28 = tpu.matmul %25, %27, %cst_37 {dimension_numbers = #tpu.dot_dimension_numbers<[1], [0], [0], [1], [0, 0, 1, 1], [], []>} : vector<16x72xf32>, vector<72x128xf32>, vector<16x128xf32> -> vector<16x128xf32>
    %29 = arith.addf %24, %28 : vector<16x128xf32>
    %cst_38 = arith.constant 0.000000e+00 : f32
    %30 = vector.broadcast %cst_38 : f32 to vector<16x128xf32>
    %31 = arith.maximumf %29, %30 : vector<16x128xf32>
    %cst_39 = arith.constant 0.000000e+00 : f32
    %32 = vector.broadcast %cst_39 : f32 to vector<18x144xf32>
    %c0_40 = arith.constant 0 : index
    %c0_41 = arith.constant 0 : index
    %33 = vector.load %arg6[%c0_40, %c0_41] : memref<18x144xf32, #tpu.memory_space<vmem>>, vector<18x144xf32>
    tpu.vector_store %arg6[%c0_40, %c0_41], %32 {strides = array<i32>} : memref<18x144xf32, #tpu.memory_space<vmem>>, vector<18x144xf32>,
    %34 = vector.extract_strided_slice %31 {offsets = [0, 0], sizes = [16, 16], strides = [1, 1]} : vector<16x128xf32> to vector<16x16xf32>
    %c1_42 = arith.constant 1 : index
    %c1_43 = arith.constant 1 : index
    %35 = vector.load %arg6[%c1_42, %c1_43] : memref<18x144xf32, #tpu.memory_space<vmem>>, vector<16x16xf32>
    tpu.vector_store %arg6[%c1_42, %c1_43], %34 {strides = array<i32>} : memref<18x144xf32, #tpu.memory_space<vmem>>, vector<16x16xf32>,
    %36 = vector.extract_strided_slice %31 {offsets = [0, 16], sizes = [16, 16], strides = [1, 1]} : vector<16x128xf32> to vector<16x16xf32>
    %c1_44 = arith.constant 1 : index
    %c19_45 = arith.constant 19 : index
    %37 = vector.load %arg6[%c1_44, %c19_45] : memref<18x144xf32, #tpu.memory_space<vmem>>, vector<16x16xf32>
    tpu.vector_store %arg6[%c1_44, %c19_45], %36 {strides = array<i32>} : memref<18x144xf32, #tpu.memory_space<vmem>>, vector<16x16xf32>,
    %38 = vector.extract_strided_slice %31 {offsets = [0, 32], sizes = [16, 16], strides = [1, 1]} : vector<16x128xf32> to vector<16x16xf32>
    %c1_46 = arith.constant 1 : index
    %c37_47 = arith.constant 37 : index
    %39 = vector.load %arg6[%c1_46, %c37_47] : memref<18x144xf32, #tpu.memory_space<vmem>>, vector<16x16xf32>
    tpu.vector_store %arg6[%c1_46, %c37_47], %38 {strides = array<i32>} : memref<18x144xf32, #tpu.memory_space<vmem>>, vector<16x16xf32>,
    %40 = vector.extract_strided_slice %31 {offsets = [0, 48], sizes = [16, 16], strides = [1, 1]} : vector<16x128xf32> to vector<16x16xf32>
    %c1_48 = arith.constant 1 : index
    %c55_49 = arith.constant 55 : index
    %41 = vector.load %arg6[%c1_48, %c55_49] : memref<18x144xf32, #tpu.memory_space<vmem>>, vector<16x16xf32>
    tpu.vector_store %arg6[%c1_48, %c55_49], %40 {strides = array<i32>} : memref<18x144xf32, #tpu.memory_space<vmem>>, vector<16x16xf32>,
    %42 = vector.extract_strided_slice %31 {offsets = [0, 64], sizes = [16, 16], strides = [1, 1]} : vector<16x128xf32> to vector<16x16xf32>
    %c1_50 = arith.constant 1 : index
    %c73 = arith.constant 73 : index
    %43 = vector.load %arg6[%c1_50, %c73] : memref<18x144xf32, #tpu.memory_space<vmem>>, vector<16x16xf32>
    tpu.vector_store %arg6[%c1_50, %c73], %42 {strides = array<i32>} : memref<18x144xf32, #tpu.memory_space<vmem>>, vector<16x16xf32>,
    %44 = vector.extract_strided_slice %31 {offsets = [0, 80], sizes = [16, 16], strides = [1, 1]} : vector<16x128xf32> to vector<16x16xf32>
    %c1_51 = arith.constant 1 : index
    %c91 = arith.constant 91 : index
    %45 = vector.load %arg6[%c1_51, %c91] : memref<18x144xf32, #tpu.memory_space<vmem>>, vector<16x16xf32>
    tpu.vector_store %arg6[%c1_51, %c91], %44 {strides = array<i32>} : memref<18x144xf32, #tpu.memory_space<vmem>>, vector<16x16xf32>,
    %46 = vector.extract_strided_slice %31 {offsets = [0, 96], sizes = [16, 16], strides = [1, 1]} : vector<16x128xf32> to vector<16x16xf32>
    %c1_52 = arith.constant 1 : index
    %c109 = arith.constant 109 : index
    %47 = vector.load %arg6[%c1_52, %c109] : memref<18x144xf32, #tpu.memory_space<vmem>>, vector<16x16xf32>
    tpu.vector_store %arg6[%c1_52, %c109], %46 {strides = array<i32>} : memref<18x144xf32, #tpu.memory_space<vmem>>, vector<16x16xf32>,
    %48 = vector.extract_strided_slice %31 {offsets = [0, 112], sizes = [16, 16], strides = [1, 1]} : vector<16x128xf32> to vector<16x16xf32>
    %c1_53 = arith.constant 1 : index
    %c127 = arith.constant 127 : index
    %49 = vector.load %arg6[%c1_53, %c127] : memref<18x144xf32, #tpu.memory_space<vmem>>, vector<16x16xf32>
    tpu.vector_store %arg6[%c1_53, %c127], %48 {strides = array<i32>} : memref<18x144xf32, #tpu.memory_space<vmem>>, vector<16x16xf32>,
    %cst_54 = arith.constant 0.000000e+00 : f32
    %50 = vector.broadcast %cst_54 : f32 to vector<16x128xf32>
    %c0_55 = arith.constant 0 : index
    %c0_56 = arith.constant 0 : index
    %51 = vector.load %arg6[%c0_55, %c0_56] : memref<18x144xf32, #tpu.memory_space<vmem>>, vector<16x144xf32>
    %c0_57 = arith.constant 0 : index
    %c0_58 = arith.constant 0 : index
    %c0_59 = arith.constant 0 : index
    %52 = vector.load %arg3[%c0_57, %c0_58, %c0_59] : memref<3x144x128xf32, #tpu.memory_space<vmem>>, vector<1x144x128xf32>
    %53 = vector.shape_cast %52 : vector<1x144x128xf32> to vector<144x128xf32>
    %cst_60 = arith.constant dense<0.000000e+00> : vector<16x128xf32>
    %54 = tpu.matmul %51, %53, %cst_60 {dimension_numbers = #tpu.dot_dimension_numbers<[1], [0], [0], [1], [0, 0, 1, 1], [], []>} : vector<16x144xf32>, vector<144x128xf32>, vector<16x128xf32> -> vector<16x128xf32>
    %55 = arith.addf %50, %54 : vector<16x128xf32>
    %c1_61 = arith.constant 1 : index
    %c0_62 = arith.constant 0 : index
    %56 = vector.load %arg6[%c1_61, %c0_62] : memref<18x144xf32, #tpu.memory_space<vmem>>, vector<16x144xf32>
    %c1_63 = arith.constant 1 : index
    %c0_64 = arith.constant 0 : index
    %c0_65 = arith.constant 0 : index
    %57 = vector.load %arg3[%c1_63, %c0_64, %c0_65] : memref<3x144x128xf32, #tpu.memory_space<vmem>>, vector<1x144x128xf32>
    %58 = vector.shape_cast %57 : vector<1x144x128xf32> to vector<144x128xf32>
    %cst_66 = arith.constant dense<0.000000e+00> : vector<16x128xf32>
    %59 = tpu.matmul %56, %58, %cst_66 {dimension_numbers = #tpu.dot_dimension_numbers<[1], [0], [0], [1], [0, 0, 1, 1], [], []>} : vector<16x144xf32>, vector<144x128xf32>, vector<16x128xf32> -> vector<16x128xf32>
    %60 = arith.addf %55, %59 : vector<16x128xf32>
    %c2_67 = arith.constant 2 : index
    %c0_68 = arith.constant 0 : index
    %61 = vector.load %arg6[%c2_67, %c0_68] : memref<18x144xf32, #tpu.memory_space<vmem>>, vector<16x144xf32>
    %c2_69 = arith.constant 2 : index
    %c0_70 = arith.constant 0 : index
    %c0_71 = arith.constant 0 : index
    %62 = vector.load %arg3[%c2_69, %c0_70, %c0_71] : memref<3x144x128xf32, #tpu.memory_space<vmem>>, vector<1x144x128xf32>
    %63 = vector.shape_cast %62 : vector<1x144x128xf32> to vector<144x128xf32>
    %cst_72 = arith.constant dense<0.000000e+00> : vector<16x128xf32>
    %64 = tpu.matmul %61, %63, %cst_72 {dimension_numbers = #tpu.dot_dimension_numbers<[1], [0], [0], [1], [0, 0, 1, 1], [], []>} : vector<16x144xf32>, vector<144x128xf32>, vector<16x128xf32> -> vector<16x128xf32>
    %65 = arith.addf %60, %64 : vector<16x128xf32>
    %cst_73 = arith.constant 0.000000e+00 : f32
    %66 = vector.broadcast %cst_73 : f32 to vector<16x128xf32>
    %67 = arith.maximumf %65, %66 : vector<16x128xf32>
    %68 = vector.extract_strided_slice %67 {offsets = [0, 0], sizes = [16, 16], strides = [1, 1]} : vector<16x128xf32> to vector<16x16xf32>
    %c0_74 = arith.constant 0 : index
    %c0_75 = arith.constant 0 : index
    %c0_76 = arith.constant 0 : index
    %c0_77 = arith.constant 0 : index
    %69 = vector.load %arg4[%c0_74, %c0_75, %c0_76, %c0_77] : memref<1x8x16x16xf32, #tpu.memory_space<vmem>>, vector<1x1x16x16xf32>
    %70 = vector.shape_cast %69 : vector<1x1x16x16xf32> to vector<16x16xf32>
    %71 = vector.shape_cast %68 : vector<16x16xf32> to vector<1x1x16x16xf32>
    tpu.vector_store %arg4[%c0_74, %c0_75, %c0_76, %c0_77], %71 {strides = array<i32>} : memref<1x8x16x16xf32, #tpu.memory_space<vmem>>, vector<1x1x16x16xf32>,
    %72 = vector.extract_strided_slice %67 {offsets = [0, 16], sizes = [16, 16], strides = [1, 1]} : vector<16x128xf32> to vector<16x16xf32>
    %c0_78 = arith.constant 0 : index
    %c1_79 = arith.constant 1 : index
    %c0_80 = arith.constant 0 : index
    %c0_81 = arith.constant 0 : index
    %73 = vector.load %arg4[%c0_78, %c1_79, %c0_80, %c0_81] : memref<1x8x16x16xf32, #tpu.memory_space<vmem>>, vector<1x1x16x16xf32>
    %74 = vector.shape_cast %73 : vector<1x1x16x16xf32> to vector<16x16xf32>
    %75 = vector.shape_cast %72 : vector<16x16xf32> to vector<1x1x16x16xf32>
    tpu.vector_store %arg4[%c0_78, %c1_79, %c0_80, %c0_81], %75 {strides = array<i32>} : memref<1x8x16x16xf32, #tpu.memory_space<vmem>>, vector<1x1x16x16xf32>,
    %76 = vector.extract_strided_slice %67 {offsets = [0, 32], sizes = [16, 16], strides = [1, 1]} : vector<16x128xf32> to vector<16x16xf32>
    %c0_82 = arith.constant 0 : index
    %c2_83 = arith.constant 2 : index
    %c0_84 = arith.constant 0 : index
    %c0_85 = arith.constant 0 : index
    %77 = vector.load %arg4[%c0_82, %c2_83, %c0_84, %c0_85] : memref<1x8x16x16xf32, #tpu.memory_space<vmem>>, vector<1x1x16x16xf32>
    %78 = vector.shape_cast %77 : vector<1x1x16x16xf32> to vector<16x16xf32>
    %79 = vector.shape_cast %76 : vector<16x16xf32> to vector<1x1x16x16xf32>
    tpu.vector_store %arg4[%c0_82, %c2_83, %c0_84, %c0_85], %79 {strides = array<i32>} : memref<1x8x16x16xf32, #tpu.memory_space<vmem>>, vector<1x1x16x16xf32>,
    %80 = vector.extract_strided_slice %67 {offsets = [0, 48], sizes = [16, 16], strides = [1, 1]} : vector<16x128xf32> to vector<16x16xf32>
    %c0_86 = arith.constant 0 : index
    %c3_87 = arith.constant 3 : index
    %c0_88 = arith.constant 0 : index
    %c0_89 = arith.constant 0 : index
    %81 = vector.load %arg4[%c0_86, %c3_87, %c0_88, %c0_89] : memref<1x8x16x16xf32, #tpu.memory_space<vmem>>, vector<1x1x16x16xf32>
    %82 = vector.shape_cast %81 : vector<1x1x16x16xf32> to vector<16x16xf32>
    %83 = vector.shape_cast %80 : vector<16x16xf32> to vector<1x1x16x16xf32>
    tpu.vector_store %arg4[%c0_86, %c3_87, %c0_88, %c0_89], %83 {strides = array<i32>} : memref<1x8x16x16xf32, #tpu.memory_space<vmem>>, vector<1x1x16x16xf32>,
    %84 = vector.extract_strided_slice %67 {offsets = [0, 64], sizes = [16, 16], strides = [1, 1]} : vector<16x128xf32> to vector<16x16xf32>
    %c0_90 = arith.constant 0 : index
    %c4 = arith.constant 4 : index
    %c0_91 = arith.constant 0 : index
    %c0_92 = arith.constant 0 : index
    %85 = vector.load %arg4[%c0_90, %c4, %c0_91, %c0_92] : memref<1x8x16x16xf32, #tpu.memory_space<vmem>>, vector<1x1x16x16xf32>
    %86 = vector.shape_cast %85 : vector<1x1x16x16xf32> to vector<16x16xf32>
    %87 = vector.shape_cast %84 : vector<16x16xf32> to vector<1x1x16x16xf32>
    tpu.vector_store %arg4[%c0_90, %c4, %c0_91, %c0_92], %87 {strides = array<i32>} : memref<1x8x16x16xf32, #tpu.memory_space<vmem>>, vector<1x1x16x16xf32>,
    %88 = vector.extract_strided_slice %67 {offsets = [0, 80], sizes = [16, 16], strides = [1, 1]} : vector<16x128xf32> to vector<16x16xf32>
    %c0_93 = arith.constant 0 : index
    %c5 = arith.constant 5 : index
    %c0_94 = arith.constant 0 : index
    %c0_95 = arith.constant 0 : index
    %89 = vector.load %arg4[%c0_93, %c5, %c0_94, %c0_95] : memref<1x8x16x16xf32, #tpu.memory_space<vmem>>, vector<1x1x16x16xf32>
    %90 = vector.shape_cast %89 : vector<1x1x16x16xf32> to vector<16x16xf32>
    %91 = vector.shape_cast %88 : vector<16x16xf32> to vector<1x1x16x16xf32>
    tpu.vector_store %arg4[%c0_93, %c5, %c0_94, %c0_95], %91 {strides = array<i32>} : memref<1x8x16x16xf32, #tpu.memory_space<vmem>>, vector<1x1x16x16xf32>,
    %92 = vector.extract_strided_slice %67 {offsets = [0, 96], sizes = [16, 16], strides = [1, 1]} : vector<16x128xf32> to vector<16x16xf32>
    %c0_96 = arith.constant 0 : index
    %c6 = arith.constant 6 : index
    %c0_97 = arith.constant 0 : index
    %c0_98 = arith.constant 0 : index
    %93 = vector.load %arg4[%c0_96, %c6, %c0_97, %c0_98] : memref<1x8x16x16xf32, #tpu.memory_space<vmem>>, vector<1x1x16x16xf32>
    %94 = vector.shape_cast %93 : vector<1x1x16x16xf32> to vector<16x16xf32>
    %95 = vector.shape_cast %92 : vector<16x16xf32> to vector<1x1x16x16xf32>
    tpu.vector_store %arg4[%c0_96, %c6, %c0_97, %c0_98], %95 {strides = array<i32>} : memref<1x8x16x16xf32, #tpu.memory_space<vmem>>, vector<1x1x16x16xf32>,
    %96 = vector.extract_strided_slice %67 {offsets = [0, 112], sizes = [16, 16], strides = [1, 1]} : vector<16x128xf32> to vector<16x16xf32>
    %c0_99 = arith.constant 0 : index
    %c7 = arith.constant 7 : index
    %c0_100 = arith.constant 0 : index
    %c0_101 = arith.constant 0 : index
    %97 = vector.load %arg4[%c0_99, %c7, %c0_100, %c0_101] : memref<1x8x16x16xf32, #tpu.memory_space<vmem>>, vector<1x1x16x16xf32>
    %98 = vector.shape_cast %97 : vector<1x1x16x16xf32> to vector<16x16xf32>
    %99 = vector.shape_cast %96 : vector<16x16xf32> to vector<1x1x16x16xf32>
    tpu.vector_store %arg4[%c0_99, %c7, %c0_100, %c0_101], %99 {strides = array<i32>} : memref<1x8x16x16xf32, #tpu.memory_space<vmem>>, vector<1x1x16x16xf32>,
    return
  }
  func.func @transform_0(%arg0: i32) -> (i32, i32, i32, i32) {
    %c0_i32 = arith.constant 0 : i32
    %c0_i32_0 = arith.constant 0 : i32
    %c0_i32_1 = arith.constant 0 : i32
    %c0_i32_2 = arith.constant 0 : i32
    return %arg0, %c0_i32, %c0_i32_0, %c0_i32_1 : i32, i32, i32, i32
  }
  func.func @transform_1(%arg0: i32) -> (i32, i32, i32) {
    %c0_i32 = arith.constant 0 : i32
    %c0_i32_0 = arith.constant 0 : i32
    %c0_i32_1 = arith.constant 0 : i32
    %c0_i32_2 = arith.constant 0 : i32
    return %c0_i32, %c0_i32_0, %c0_i32_1 : i32, i32, i32
  }
  func.func @transform_2(%arg0: i32) -> (i32, i32, i32) {
    %c0_i32 = arith.constant 0 : i32
    %c0_i32_0 = arith.constant 0 : i32
    %c0_i32_1 = arith.constant 0 : i32
    %c0_i32_2 = arith.constant 0 : i32
    return %c0_i32, %c0_i32_0, %c0_i32_1 : i32, i32, i32
  }
  func.func @transform_3(%arg0: i32) -> (i32, i32, i32, i32) {
    %c0_i32 = arith.constant 0 : i32
    %c0_i32_0 = arith.constant 0 : i32
    %c0_i32_1 = arith.constant 0 : i32
    %c0_i32_2 = arith.constant 0 : i32
    return %arg0, %c0_i32, %c0_i32_0, %c0_i32_1 : i32, i32, i32, i32
  }
}

</mosaic_0001>

<llo_original>
// kernel: double_conv.1
$region0: #{double_conv.1}
  #allocation0 [shape = 'u32[]', space=smem, size = 0x4, offset = 0x4, fixed_abs, tag = 'smem constant byte address 0x4 - core index']
  #allocation1 [shape = 'u32[144,128]{1,0:T(1,128)}', space=vmem, size = 0x12000, scoped, tag = 'internal scratch']
  #allocation2 [shape = 'f32[18,72]{1,0:T(8,128)}', space=vmem, size = 0x3000, scoped, tag = 'scratch operand']
  #allocation3 [shape = 'f32[18,144]{1,0:T(8,128)}', space=vmem, size = 0x6000, scoped, tag = 'scratch operand']
  %s0 = inlined_call_operand.vmem [shape: f32[2,4,16,16], index: 0, kind: input, shape index: {}]
  %s1 = inlined_call_operand.vmem [shape: f32[3,72,128], index: 1, kind: input, shape index: {}]
  %s2 = inlined_call_operand.vmem [shape: f32[3,144,128], index: 2, kind: input, shape index: {}]
  %s3 = inlined_call_operand.hbm [shape: f32[2,8,16,16], index: 3, kind: output, shape index: {}]
  %s4 = sld [smem:[#allocation0]]
  $region45: #{double_conv.1} parent=0
    _
  %s6 = ssub.s32 1, %s4
  %s7 = scalar_select 0, %s6, %s4
  $region1: #{double_conv.1} parent=0
    #allocation4 [shape = 'u8[131072]{0}', space=vmem, size = 0x20000, scoped, tag = 'output window, operand 0']
    #allocation5 [shape = 's32[2]{0}', space=sflag, size = 0x8, scoped, tag = 'scoped memory for double_conv.1']
    %8 = vsyncpa [#allocation5], 0
    %s9 = scalar_lea.sflag [#allocation5], 1
    %10 = vsyncpa %s9, 0
    loop: start=0, step=1, limit=4
    $region2: #{double_conv.1} parent=1 // loop_pre_header
      _
    $region3: #{double_conv.1} parent=1 // loop_header
      %s12 = sphi 0, %s16
      %p13 = scmp.ge.s32.totalorder %s12, 4
      %s22 = sphi 0, %s24
      %s25 = sphi 0, %s22
      %s26 = sphi 0, %s25
      %s42 = sphi 0, %s26
      %s46 = sphi 0, %s46
      %s48 = sphi 0, %s46
      %s49 = sphi 0, %s48
      %s63 = sphi 0, %s49
      %s67 = sphi 0, %s67
      %s69 = sphi 0, %s67
      %s70 = sphi 0, %s69
      %s84 = sphi 0, %s70
      %s90 = sphi 0, %s92
      %s93 = sphi 0, %s90
      %s94 = sphi 0, %s93
      %s110 = sphi 0, %s94
    $region4: #{double_conv.1} parent=1 // loop_header_branch
      %15 = sbr.rel (%p13) target = $region8
    $region5: #{double_conv.1} parent=1 // loop_body
      %s17 = ssub.s32 %s12, 1
      %s18 = ssub.s32 %s12, 2
      %s19 = sadd.s32 %s12, 1
      %s20 = ssub.s32 %s12, %s19
      %p21 = scmp.eq.s32.totalorder %s20, 0
      %s23 = sadd.s32 %s22, 1
      %s24 = scalar_select %p21, %s22, %s23
      %p27 = pneg %p21
      %p28 = scmp.eq.s32.totalorder %s12, 1
      %p29 = por %p27, %p28
      %p30 = scmp.ne.s32.totalorder %s22, %s25
      %p31 = scmp.eq.s32.totalorder %s12, 0
      %p32 = por %p30, %p31
      %p33 = scmp.ne.s32.totalorder %s22, %s25
      %p34 = scmp.eq.s32.totalorder %s17, 1
      %p35 = por %p33, %p34
      %p36 = scmp.ne.s32.totalorder %s25, %s26
      %p37 = scmp.eq.s32.totalorder %s17, 0
      %p38 = por %p36, %p37
      %p39 = scmp.ne.s32.totalorder %s25, %s26
      %p40 = scmp.eq.s32.totalorder %s18, 1
      %p41 = por %p39, %p40
      %p43 = scmp.ne.s32.totalorder %s26, %s42
      %p44 = scmp.eq.s32.totalorder %s18, 0
      %p45 = por %p43, %p44
      %s47 = sadd.s32 %s46, 1
      %p50 = scmp.eq.s32.totalorder %s12, 1
      %p51 = scmp.ne.s32.totalorder %s46, %s48
      %p52 = scmp.eq.s32.totalorder %s12, 0
      %p53 = por %p51, %p52
      %p54 = scmp.ne.s32.totalorder %s46, %s48
      %p55 = scmp.eq.s32.totalorder %s17, 1
      %p56 = por %p54, %p55
      %p57 = scmp.ne.s32.totalorder %s48, %s49
      %p58 = scmp.eq.s32.totalorder %s17, 0
      %p59 = por %p57, %p58
      %p60 = scmp.ne.s32.totalorder %s48, %s49
      %p61 = scmp.eq.s32.totalorder %s18, 1
      %p62 = por %p60, %p61
      %p64 = scmp.ne.s32.totalorder %s49, %s63
      %p65 = scmp.eq.s32.totalorder %s18, 0
      %p66 = por %p64, %p65
      %s68 = sadd.s32 %s67, 1
      %p71 = scmp.eq.s32.totalorder %s12, 1
      %p72 = scmp.ne.s32.totalorder %s67, %s69
      %p73 = scmp.eq.s32.totalorder %s12, 0
      %p74 = por %p72, %p73
      %p75 = scmp.ne.s32.totalorder %s67, %s69
      %p76 = scmp.eq.s32.totalorder %s17, 1
      %p77 = por %p75, %p76
      %p78 = scmp.ne.s32.totalorder %s69, %s70
      %p79 = scmp.eq.s32.totalorder %s17, 0
      %p80 = por %p78, %p79
      %p81 = scmp.ne.s32.totalorder %s69, %s70
      %p82 = scmp.eq.s32.totalorder %s18, 1
      %p83 = por %p81, %p82
      %p85 = scmp.ne.s32.totalorder %s70, %s84
      %p86 = scmp.eq.s32.totalorder %s18, 0
      %p87 = por %p85, %p86
      %s88 = ssub.s32 %s12, %s19
      %p89 = scmp.eq.s32.totalorder %s88, 0
      %s91 = sadd.s32 %s90, 1
      %s92 = scalar_select %p89, %s90, %s91
      %p95 = pneg %p89
      %p96 = scmp.eq.s32.totalorder %s12, 1
      %p97 = por %p95, %p96
      %p98 = scmp.ne.s32.totalorder %s90, %s93
      %p99 = scmp.eq.s32.totalorder %s12, 0
      %p100 = por %p98, %p99
      %p101 = scmp.ne.s32.totalorder %s90, %s93
      %p102 = scmp.eq.s32.totalorder %s17, 1
      %p103 = por %p101, %p102
      %p104 = scmp.ne.s32.totalorder %s93, %s94
      %p105 = scmp.eq.s32.totalorder %s17, 0
      %p106 = por %p104, %p105
      %p107 = scmp.ne.s32.totalorder %s93, %s94
      %p108 = scmp.eq.s32.totalorder %s18, 1
      %p109 = por %p107, %p108
      %p111 = scmp.ne.s32.totalorder %s94, %s110
      %p112 = scmp.eq.s32.totalorder %s18, 0
      %p113 = por %p111, %p112
      %p114 = scmp.le.s32.totalorder 1, %s12
      %p115 = scmp.lt.s32.totalorder %s12, 3
      %p116 = pnand %p114, %p115
      %p117 = pneg %p116
      // Predicated region
      $region9: #{double_conv.1} parent=5 // pred_check
        _
      $region10: #{double_conv.1} parent=5 // pred_check_branch
        %119 = sbr.rel (%p116) target = $region12
      $region11: #{double_conv.1} parent=5 // pred_region
        %s120 = ssub.s32 %s12, 1
        // Predicated region
        $region13: #{double_conv.1} parent=11 // pred_check
          %p121 = pneg %p59
        $region14: #{double_conv.1} parent=11 // pred_check_branch
          %123 = sbr.rel (%p121) target = $region16
        $region15: #{double_conv.1} parent=11 // pred_region
          _
        $region16: #{double_conv.1} parent=11 // pred_fallthru
          _
        // Predicated region
        $region17: #{double_conv.1} parent=11 // pred_check
          %p124 = pneg %p80
        $region18: #{double_conv.1} parent=11 // pred_check_branch
          %126 = sbr.rel (%p124) target = $region20
        $region19: #{double_conv.1} parent=11 // pred_region
          _
        $region20: #{double_conv.1} parent=11 // pred_fallthru
          _
      $region12: #{double_conv.1} parent=5 // pred_fallthru
        _
      %p127 = scmp.lt.s32.totalorder %s12, 2
      // Predicated region
      $region21: #{double_conv.1} parent=5 // pred_check
        %p128 = pneg %p127
      $region22: #{double_conv.1} parent=5 // pred_check_branch
        %130 = sbr.rel (%p128) target = $region24
      $region23: #{double_conv.1} parent=5 // pred_region
        // Predicated region
        $region25: #{double_conv.1} parent=23 // pred_check
          %p131 = pneg %p32
        $region26: #{double_conv.1} parent=23 // pred_check_branch
          %133 = sbr.rel (%p131) target = $region28
        $region27: #{double_conv.1} parent=23 // pred_region
          %p134 = scmp.lt.s32.totalorder %s12, 1
          %s135 = scalar_select %p134, %s12, 1
          %s136 = smul.addr %s135, 8
          %s137 = smul.addr %s136, 8
          %s138 = scalar_lea.vmem %s0, %s137
        $region28: #{double_conv.1} parent=23 // pred_fallthru
          _
      $region24: #{double_conv.1} parent=5 // pred_fallthru
        _
      %p139 = scmp.le.s32.totalorder 1, %s12
      %p140 = scmp.lt.s32.totalorder %s12, 3
      %p141 = pnand %p139, %p140
      %p142 = pneg %p141
      // Predicated region
      $region29: #{double_conv.1} parent=5 // pred_check
        _
      $region30: #{double_conv.1} parent=5 // pred_check_branch
        %144 = sbr.rel (%p141) target = $region32
      $region31: #{double_conv.1} parent=5 // pred_region
        %s145 = ssub.s32 %s12, 1
        %p146 = scmp.lt.s32.totalorder %s17, 1
        %s147 = scalar_select %p146, %s17, 1
        %s148 = smul.addr %s147, 8
        %s149 = smul.addr %s148, 8
        %s150 = scalar_lea.vmem %s0, %s149
        %p151 = pneg %p38
        %p152 = pneg %p35
        %p153 = pneg %p59
        %p154 = pneg %p56
        %p155 = pneg %p80
        %p156 = pneg %p77
        %p157 = pneg %p106
        %p158 = pneg %p103
        %s159 = sand.u32 %s93, 1
        %s160 = scalar_lea.sflag [#allocation5], %s159
        %s161 = sand.u32 %s93, 1
        %s162 = smul.addr %s161, 128
        %s163 = scalar_lea.vmem [#allocation4], %s162
        %p164 = scmp.lt.s32.totalorder %s17, 1
        %s165 = scalar_select %p164, %s17, 1
        %s166 = smul.addr %s165, 8
        %s167 = smul.addr %s166, 8
        %s168 = scalar_lea.vmem %s0, %s167
        %vm169 = vcmask 588800
        %170 = vst.msk [vmem:[#allocation2] sm:$0xff] %vm169, 0.0
        %171 = vst.msk [vmem:[#allocation2 + $0x8] sm:$0xff] %vm169, 0.0
        %vm172 = vcmask 582656
        %173 = vst.msk [vmem:[#allocation2 + $0x10] sm:$0x3] %vm172, 0.0
        %v174 = vld [vmem:[%s168] sm:$0xff]
        %v175 = vld [vmem:[%s168 + $0x8] sm:$0xff]
        %178 = vrot.lane.b32.xlu0 %v174, 1
        %v179 = vpop.permute.xlu0 %178
        %180 = vrot.lane.b32.xlu0 %v175, 1
        %v181 = vpop.permute.xlu0 %180
        %vm184 = vcmask 138248
        %185 = vst.msk [vmem:[#allocation2 + $0x1] sm:$0xff] %vm184, %v179
        %186 = vst.msk [vmem:[#allocation2 + $0x9] sm:$0xff] %vm184, %v181
        %s187 = scalar_lea.vmem %s168, 16
        %v188 = vld [vmem:[%s187] sm:$0xff]
        %v189 = vld [vmem:[%s187 + $0x8] sm:$0xff]
        %192 = vrot.lane.b32.xlu0 %v188, 19
        %v193 = vpop.permute.xlu0 %192
        %194 = vrot.lane.b32.xlu0 %v189, 19
        %v195 = vpop.permute.xlu0 %194
        %vm198 = vcmask 285848
        %199 = vst.msk [vmem:[#allocation2 + $0x1] sm:$0xff] %vm198, %v193
        %200 = vst.msk [vmem:[#allocation2 + $0x9] sm:$0xff] %vm198, %v195
        %s201 = scalar_lea.vmem %s168, 32
        %v202 = vld [vmem:[%s201] sm:$0xff]
        %v203 = vld [vmem:[%s201 + $0x8] sm:$0xff]
        %206 = vrot.lane.b32.xlu0 %v202, 37
        %v207 = vpop.permute.xlu0 %206
        %208 = vrot.lane.b32.xlu0 %v203, 37
        %v209 = vpop.permute.xlu0 %208
        %vm212 = vcmask 433448
        %213 = vst.msk [vmem:[#allocation2 + $0x1] sm:$0xff] %vm212, %v207
        %214 = vst.msk [vmem:[#allocation2 + $0x9] sm:$0xff] %vm212, %v209
        %s215 = scalar_lea.vmem %s168, 48
        %v216 = vld [vmem:[%s215] sm:$0xff]
        %v217 = vld [vmem:[%s215 + $0x8] sm:$0xff]
        %220 = vrot.lane.b32.xlu0 %v216, 55
        %v221 = vpop.permute.xlu0 %220
        %222 = vrot.lane.b32.xlu0 %v217, 55
        %v223 = vpop.permute.xlu0 %222
        %vm226 = vcmask 581048
        %227 = vst.msk [vmem:[#allocation2 + $0x1] sm:$0xff] %vm226, %v221
        %228 = vst.msk [vmem:[#allocation2 + $0x9] sm:$0xff] %vm226, %v223
        %v229 = vld [vmem:[#allocation2] sm:$0xff]
        %v230 = vld [vmem:[#allocation2 + $0x8] sm:$0xff]
        %v231 = vld [vmem:[%s1] sm:$0xff]
        %v232 = vld [vmem:[%s1 + $0x8] sm:$0xff]
        %v233 = vld [vmem:[%s1 + $0x10] sm:$0xff]
        %v234 = vld [vmem:[%s1 + $0x18] sm:$0xff]
        %v235 = vld [vmem:[%s1 + $0x20] sm:$0xff]
        %v236 = vld [vmem:[%s1 + $0x28] sm:$0xff]
        %v237 = vld [vmem:[%s1 + $0x30] sm:$0xff]
        %v238 = vld [vmem:[%s1 + $0x38] sm:$0xff]
        %v239 = vld [vmem:[%s1 + $0x40] sm:$0xff]
        %v240 = vld [vmem:[#allocation2 + $0x1] sm:$0xff]
        %v241 = vld [vmem:[#allocation2 + $0x9] sm:$0xff]
        %s242 = scalar_lea.vmem %s1, 72
        %v243 = vld [vmem:[%s242] sm:$0xff]
        %v244 = vld [vmem:[%s242 + $0x8] sm:$0xff]
        %v245 = vld [vmem:[%s242 + $0x10] sm:$0xff]
        %v246 = vld [vmem:[%s242 + $0x18] sm:$0xff]
        %v247 = vld [vmem:[%s242 + $0x20] sm:$0xff]
        %v248 = vld [vmem:[%s242 + $0x28] sm:$0xff]
        %v249 = vld [vmem:[%s242 + $0x30] sm:$0xff]
        %v250 = vld [vmem:[%s242 + $0x38] sm:$0xff]
        %v251 = vld [vmem:[%s242 + $0x40] sm:$0xff]
        %v253 = vsel %vm169, %v240, 0
        %v256 = vsel %vm169, %v241, 0
        %258 = vmatprep.subr.mxu0 0.0
        %259 = vmatpush1.msra.mxu0 0.0
        %260 = vmatprep.subr.mxu0 0.0
        %261 = vmatpush1.msra.mxu0 0.0
        %262 = vmatprep.subr.mxu0 0.0
        %263 = vmatpush1.msra.mxu0 0.0
        %264 = vmatprep.subr.mxu0 0.0
        %265 = vmatpush1.msra.mxu0 0.0
        %266 = vmatprep.subr.mxu0 0.0
        %267 = vmatpush1.msra.mxu0 0.0
        %268 = vmatprep.subr.mxu0 0.0
        %269 = vmatpush1.msra.mxu0 0.0
        %270 = vmatprep.subr.mxu0 0.0
        %271 = vmatpush1.msra.mxu0 0.0
        %272 = vmatprep.subr.mxu0 0.0
        %273 = vmatpush1.msra.mxu0 %v251
        %274 = vmatprep.subr.mxu0 0.0
        %275 = vmatpush1.msra.mxu0 %v250
        %276 = vmatprep.subr.mxu0 0.0
        %277 = vmatpush1.msra.mxu0 %v249
        %278 = vmatprep.subr.mxu0 0.0
        %279 = vmatpush1.msra.mxu0 %v248
        %280 = vmatprep.subr.mxu0 0.0
        %281 = vmatpush1.msra.mxu0 %v247
        %282 = vmatprep.subr.mxu0 0.0
        %283 = vmatpush1.msra.mxu0 %v246
        %284 = vmatprep.subr.mxu0 0.0
        %285 = vmatpush1.msra.mxu0 %v245
        %286 = vmatprep.subr.mxu0 0.0
        %287 = vmatpush1.msra.mxu0 %v244
        %288 = vmatprep.subr.mxu0 0.0
        %289 = vmatpush1.msra.mxu0 %v243
        %290 = vmatprep.subr.mxu0 0.0
        %291 = vmatpush2.msra.mxu0 0.0
        %292 = vmatprep.subr.mxu0 0.0
        %293 = vmatpush2.msra.mxu0 0.0
        %294 = vmatprep.subr.mxu0 0.0
        %295 = vmatpush2.msra.mxu0 0.0
        %296 = vmatprep.subr.mxu0 0.0
        %297 = vmatpush2.msra.mxu0 0.0
        %298 = vmatprep.subr.mxu0 0.0
        %299 = vmatpush2.msra.mxu0 0.0
        %300 = vmatprep.subr.mxu0 0.0
        %301 = vmatpush2.msra.mxu0 0.0
        %302 = vmatprep.subr.mxu0 0.0
        %303 = vmatpush2.msra.mxu0 0.0
        %304 = vmatprep.subr.mxu0 0.0
        %305 = vmatpush2.msra.mxu0 0.0
        %306 = vmatprep.subr.mxu0 0.0
        %307 = vmatpush2.msra.mxu0 0.0
        %308 = vmatprep.subr.mxu0 0.0
        %309 = vmatpush2.msra.mxu0 0.0
        %310 = vmatprep.subr.mxu0 0.0
        %311 = vmatpush2.msra.mxu0 0.0
        %312 = vmatprep.subr.mxu0 0.0
        %313 = vmatpush2.msra.mxu0 0.0
        %314 = vmatprep.subr.mxu0 0.0
        %315 = vmatpush2.msra.mxu0 0.0
        %316 = vmatprep.subr.mxu0 0.0
        %317 = vmatpush2.msra.mxu0 0.0
        %318 = vmatprep.subr.mxu0 0.0
        %319 = vmatpush2.msra.mxu0 0.0
        %320 = vmatprep.subr.mxu0 0.0
        %321 = vmatpush2.msra.mxu0 0.0
        %322 = vmatprep.mubr.f32.mxu0 0.0
        %323 = vmatmul.mubr.f32.gmra.mxu0 %v253
        %v324 = vpop.f32.mrf.mxu0
        %v325 = vadd.f32 0.0, %v324
        %v326 = vpop.f32.mrf.mxu0
        %327 = vmatprep.mubr.f32.mxu0 0.0
        %328 = vmatmul.mubr.f32.gmra.mxu0 %v256
        %v329 = vpop.f32.mrf.mxu0
        %v330 = vadd.f32 0.0, %v329
        %v331 = vpop.f32.mrf.mxu0
        %332 = vdwg.mxu0
        %v334 = vsel %vm169, %v229, 0
        %v337 = vsel %vm169, %v230, 0
        %339 = vmatprep.subr.mxu0 0.0
        %340 = vmatpush1.msra.mxu0 0.0
        %341 = vmatprep.subr.mxu0 0.0
        %342 = vmatpush1.msra.mxu0 0.0
        %343 = vmatprep.subr.mxu0 0.0
        %344 = vmatpush1.msra.mxu0 0.0
        %345 = vmatprep.subr.mxu0 0.0
        %346 = vmatpush1.msra.mxu0 0.0
        %347 = vmatprep.subr.mxu0 0.0
        %348 = vmatpush1.msra.mxu0 0.0
        %349 = vmatprep.subr.mxu0 0.0
        %350 = vmatpush1.msra.mxu0 0.0
        %351 = vmatprep.subr.mxu0 0.0
        %352 = vmatpush1.msra.mxu0 0.0
        %353 = vmatprep.subr.mxu0 0.0
        %354 = vmatpush1.msra.mxu0 %v239
        %355 = vmatprep.subr.mxu0 0.0
        %356 = vmatpush1.msra.mxu0 %v238
        %357 = vmatprep.subr.mxu0 0.0
        %358 = vmatpush1.msra.mxu0 %v237
        %359 = vmatprep.subr.mxu0 0.0
        %360 = vmatpush1.msra.mxu0 %v236
        %361 = vmatprep.subr.mxu0 0.0
        %362 = vmatpush1.msra.mxu0 %v235
        %363 = vmatprep.subr.mxu0 0.0
        %364 = vmatpush1.msra.mxu0 %v234
        %365 = vmatprep.subr.mxu0 0.0
        %366 = vmatpush1.msra.mxu0 %v233
        %367 = vmatprep.subr.mxu0 0.0
        %368 = vmatpush1.msra.mxu0 %v232
        %369 = vmatprep.subr.mxu0 0.0
        %370 = vmatpush1.msra.mxu0 %v231
        %371 = vmatprep.subr.mxu0 0.0
        %372 = vmatpush2.msra.mxu0 0.0
        %373 = vmatprep.subr.mxu0 0.0
        %374 = vmatpush2.msra.mxu0 0.0
        %375 = vmatprep.subr.mxu0 0.0
        %376 = vmatpush2.msra.mxu0 0.0
        %377 = vmatprep.subr.mxu0 0.0
        %378 = vmatpush2.msra.mxu0 0.0
        %379 = vmatprep.subr.mxu0 0.0
        %380 = vmatpush2.msra.mxu0 0.0
        %381 = vmatprep.subr.mxu0 0.0
        %382 = vmatpush2.msra.mxu0 0.0
        %383 = vmatprep.subr.mxu0 0.0
        %384 = vmatpush2.msra.mxu0 0.0
        %385 = vmatprep.subr.mxu0 0.0
        %386 = vmatpush2.msra.mxu0 0.0
        %387 = vmatprep.subr.mxu0 0.0
        %388 = vmatpush2.msra.mxu0 0.0
        %389 = vmatprep.subr.mxu0 0.0
        %390 = vmatpush2.msra.mxu0 0.0
        %391 = vmatprep.subr.mxu0 0.0
        %392 = vmatpush2.msra.mxu0 0.0
        %393 = vmatprep.subr.mxu0 0.0
        %394 = vmatpush2.msra.mxu0 0.0
        %395 = vmatprep.subr.mxu0 0.0
        %396 = vmatpush2.msra.mxu0 0.0
        %397 = vmatprep.subr.mxu0 0.0
        %398 = vmatpush2.msra.mxu0 0.0
        %399 = vmatprep.subr.mxu0 0.0
        %400 = vmatpush2.msra.mxu0 0.0
        %401 = vmatprep.subr.mxu0 0.0
        %402 = vmatpush2.msra.mxu0 0.0
        %403 = vmatprep.mubr.f32.mxu0 0.0
        %404 = vmatmul.mubr.f32.gmra.mxu0 %v334
        %v405 = vpop.f32.mrf.mxu0
        %v406 = vadd.f32 %v325, %v405
        %v407 = vpop.f32.mrf.mxu0
        %408 = vmatprep.mubr.f32.mxu0 0.0
        %409 = vmatmul.mubr.f32.gmra.mxu0 %v337
        %v410 = vpop.f32.mrf.mxu0
        %v411 = vadd.f32 %v330, %v410
        %v412 = vpop.f32.mrf.mxu0
        %413 = vdwg.mxu0
        %v414 = vld [vmem:[#allocation2 + $0x2] sm:$0xff]
        %v415 = vld [vmem:[#allocation2 + $0xa] sm:$0xff]
        %s416 = scalar_lea.vmem %s1, 144
        %v417 = vld [vmem:[%s416] sm:$0xff]
        %v418 = vld [vmem:[%s416 + $0x8] sm:$0xff]
        %v419 = vld [vmem:[%s416 + $0x10] sm:$0xff]
        %v420 = vld [vmem:[%s416 + $0x18] sm:$0xff]
        %v421 = vld [vmem:[%s416 + $0x20] sm:$0xff]
        %v422 = vld [vmem:[%s416 + $0x28] sm:$0xff]
        %v423 = vld [vmem:[%s416 + $0x30] sm:$0xff]
        %v424 = vld [vmem:[%s416 + $0x38] sm:$0xff]
        %v425 = vld [vmem:[%s416 + $0x40] sm:$0xff]
        %v427 = vsel %vm169, %v414, 0
        %v430 = vsel %vm169, %v415, 0
        %432 = vmatprep.subr.mxu0 0.0
        %433 = vmatpush1.msra.mxu0 0.0
        %434 = vmatprep.subr.mxu0 0.0
        %435 = vmatpush1.msra.mxu0 0.0
        %436 = vmatprep.subr.mxu0 0.0
        %437 = vmatpush1.msra.mxu0 0.0
        %438 = vmatprep.subr.mxu0 0.0
        %439 = vmatpush1.msra.mxu0 0.0
        %440 = vmatprep.subr.mxu0 0.0
        %441 = vmatpush1.msra.mxu0 0.0
        %442 = vmatprep.subr.mxu0 0.0
        %443 = vmatpush1.msra.mxu0 0.0
        %444 = vmatprep.subr.mxu0 0.0
        %445 = vmatpush1.msra.mxu0 0.0
        %446 = vmatprep.subr.mxu0 0.0
        %447 = vmatpush1.msra.mxu0 %v425
        %448 = vmatprep.subr.mxu0 0.0
        %449 = vmatpush1.msra.mxu0 %v424
        %450 = vmatprep.subr.mxu0 0.0
        %451 = vmatpush1.msra.mxu0 %v423
        %452 = vmatprep.subr.mxu0 0.0
        %453 = vmatpush1.msra.mxu0 %v422
        %454 = vmatprep.subr.mxu0 0.0
        %455 = vmatpush1.msra.mxu0 %v421
        %456 = vmatprep.subr.mxu0 0.0
        %457 = vmatpush1.msra.mxu0 %v420
        %458 = vmatprep.subr.mxu0 0.0
        %459 = vmatpush1.msra.mxu0 %v419
        %460 = vmatprep.subr.mxu0 0.0
        %461 = vmatpush1.msra.mxu0 %v418
        %462 = vmatprep.subr.mxu0 0.0
        %463 = vmatpush1.msra.mxu0 %v417
        %464 = vmatprep.subr.mxu0 0.0
        %465 = vmatpush2.msra.mxu0 0.0
        %466 = vmatprep.subr.mxu0 0.0
        %467 = vmatpush2.msra.mxu0 0.0
        %468 = vmatprep.subr.mxu0 0.0
        %469 = vmatpush2.msra.mxu0 0.0
        %470 = vmatprep.subr.mxu0 0.0
        %471 = vmatpush2.msra.mxu0 0.0
        %472 = vmatprep.subr.mxu0 0.0
        %473 = vmatpush2.msra.mxu0 0.0
        %474 = vmatprep.subr.mxu0 0.0
        %475 = vmatpush2.msra.mxu0 0.0
        %476 = vmatprep.subr.mxu0 0.0
        %477 = vmatpush2.msra.mxu0 0.0
        %478 = vmatprep.subr.mxu0 0.0
        %479 = vmatpush2.msra.mxu0 0.0
        %480 = vmatprep.subr.mxu0 0.0
        %481 = vmatpush2.msra.mxu0 0.0
        %482 = vmatprep.subr.mxu0 0.0
        %483 = vmatpush2.msra.mxu0 0.0
        %484 = vmatprep.subr.mxu0 0.0
        %485 = vmatpush2.msra.mxu0 0.0
        %486 = vmatprep.subr.mxu0 0.0
        %487 = vmatpush2.msra.mxu0 0.0
        %488 = vmatprep.subr.mxu0 0.0
        %489 = vmatpush2.msra.mxu0 0.0
        %490 = vmatprep.subr.mxu0 0.0
        %491 = vmatpush2.msra.mxu0 0.0
        %492 = vmatprep.subr.mxu0 0.0
        %493 = vmatpush2.msra.mxu0 0.0
        %494 = vmatprep.subr.mxu0 0.0
        %495 = vmatpush2.msra.mxu0 0.0
        %496 = vmatprep.mubr.f32.mxu0 0.0
        %497 = vmatmul.mubr.f32.gmra.mxu0 %v427
        %v498 = vpop.f32.mrf.mxu0
        %v499 = vadd.f32 0.0, %v498
        %v500 = vpop.f32.mrf.mxu0
        %501 = vmatprep.mubr.f32.mxu0 0.0
        %502 = vmatmul.mubr.f32.gmra.mxu0 %v430
        %v503 = vpop.f32.mrf.mxu0
        %v504 = vadd.f32 0.0, %v503
        %v505 = vpop.f32.mrf.mxu0
        %506 = vdwg.mxu0
        %v507 = vadd.f32 %v406, %v499
        %v508 = vadd.f32 %v411, %v504
        %v509 = vmax.f32 %v507, 0.0
        %v510 = vmax.f32 %v508, 0.0
        %511 = vst [vmem:[#allocation3] sm:$0xff] 0.0
        %vm512 = vcmask 130048
        %513 = vst.msk [vmem:[#allocation3 + $0x8] sm:$0xff] %vm512, 0.0
        %514 = vst [vmem:[#allocation3 + $0x10] sm:$0xff] 0.0
        %515 = vst.msk [vmem:[#allocation3 + $0x18] sm:$0xff] %vm512, 0.0
        %516 = vst [vmem:[#allocation3 + $0x20] sm:$0x3] 0.0
        %vm517 = vcmask 123904
        %518 = vst.msk [vmem:[#allocation3 + $0x28] sm:$0x3] %vm517, 0.0
        %vm521 = vcmask 1040384
        %v522 = vrot.slane %v509, 7
        %v523 = vrot.slane %v510, 7
        %v524 = vsel %vm521, %v522, %v523
        %525 = vrot.lane.b32.xlu0 %v522, 1
        %v526 = vpop.permute.xlu0 %525
        %527 = vrot.lane.b32.xlu0 %v524, 1
        %v528 = vpop.permute.xlu0 %527
        %529 = vrot.lane.b32.xlu0 %v523, 1
        %v530 = vpop.permute.xlu0 %529
        %vm534 = vcmask 138249
        %535 = vst.msk [vmem:[#allocation3] sm:$0xfe] %vm534, %v526
        %536 = vst.msk [vmem:[#allocation3 + $0x10] sm:$0xff] %vm184, %v528
        %vm537 = vcmask 131080
        %538 = vst.msk [vmem:[#allocation3 + $0x20] sm:$0x1] %vm537, %v530
        %539 = vrot.lane.b32.xlu0 %v522, 3
        %v540 = vpop.permute.xlu0 %539
        %541 = vrot.lane.b32.xlu0 %v524, 3
        %v542 = vpop.permute.xlu0 %541
        %543 = vrot.lane.b32.xlu0 %v523, 3
        %v544 = vpop.permute.xlu0 %543
        %vm548 = vcmask 285849
        %549 = vst.msk [vmem:[#allocation3] sm:$0xfe] %vm548, %v540
        %550 = vst.msk [vmem:[#allocation3 + $0x10] sm:$0xff] %vm198, %v542
        %vm551 = vcmask 278680
        %552 = vst.msk [vmem:[#allocation3 + $0x20] sm:$0x1] %vm551, %v544
        %553 = vrot.lane.b32.xlu0 %v522, 5
        %v554 = vpop.permute.xlu0 %553
        %555 = vrot.lane.b32.xlu0 %v524, 5
        %v556 = vpop.permute.xlu0 %555
        %557 = vrot.lane.b32.xlu0 %v523, 5
        %v558 = vpop.permute.xlu0 %557
        %vm562 = vcmask 433449
        %563 = vst.msk [vmem:[#allocation3] sm:$0xfe] %vm562, %v554
        %564 = vst.msk [vmem:[#allocation3 + $0x10] sm:$0xff] %vm212, %v556
        %vm565 = vcmask 426280
        %566 = vst.msk [vmem:[#allocation3 + $0x20] sm:$0x1] %vm565, %v558
        %567 = vrot.lane.b32.xlu0 %v522, 7
        %v568 = vpop.permute.xlu0 %567
        %569 = vrot.lane.b32.xlu0 %v524, 7
        %v570 = vpop.permute.xlu0 %569
        %571 = vrot.lane.b32.xlu0 %v523, 7
        %v572 = vpop.permute.xlu0 %571
        %vm576 = vcmask 581049
        %577 = vst.msk [vmem:[#allocation3] sm:$0xfe] %vm576, %v568
        %578 = vst.msk [vmem:[#allocation3 + $0x10] sm:$0xff] %vm226, %v570
        %vm579 = vcmask 573880
        %580 = vst.msk [vmem:[#allocation3 + $0x20] sm:$0x1] %vm579, %v572
        %581 = vrot.lane.b32.xlu0 %v522, 9
        %v582 = vpop.permute.xlu0 %581
        %583 = vrot.lane.b32.xlu0 %v524, 9
        %v584 = vpop.permute.xlu0 %583
        %585 = vrot.lane.b32.xlu0 %v523, 9
        %v586 = vpop.permute.xlu0 %585
        %vm590 = vcmask 728649
        %591 = vst.msk [vmem:[#allocation3] sm:$0xfe] %vm590, %v582
        %vm592 = vcmask 728648
        %593 = vst.msk [vmem:[#allocation3 + $0x10] sm:$0xff] %vm592, %v584
        %vm594 = vcmask 721480
        %595 = vst.msk [vmem:[#allocation3 + $0x20] sm:$0x1] %vm594, %v586
        %596 = vrot.lane.b32.xlu0 %v522, 11
        %v597 = vpop.permute.xlu0 %596
        %598 = vrot.lane.b32.xlu0 %v524, 11
        %v599 = vpop.permute.xlu0 %598
        %600 = vrot.lane.b32.xlu0 %v523, 11
        %v601 = vpop.permute.xlu0 %600
        %vm605 = vcmask 876249
        %606 = vst.msk [vmem:[#allocation3] sm:$0xfe] %vm605, %v597
        %vm607 = vcmask 876248
        %608 = vst.msk [vmem:[#allocation3 + $0x10] sm:$0xff] %vm607, %v599
        %vm609 = vcmask 869080
        %610 = vst.msk [vmem:[#allocation3 + $0x20] sm:$0x1] %vm609, %v601
        %611 = vrot.lane.b32.xlu0 %v522, 13
        %v612 = vpop.permute.xlu0 %611
        %613 = vrot.lane.b32.xlu0 %v524, 13
        %v614 = vpop.permute.xlu0 %613
        %615 = vrot.lane.b32.xlu0 %v523, 13
        %v616 = vpop.permute.xlu0 %615
        %vm620 = vcmask 1023849
        %621 = vst.msk [vmem:[#allocation3] sm:$0xfe] %vm620, %v612
        %vm622 = vcmask 1023848
        %623 = vst.msk [vmem:[#allocation3 + $0x10] sm:$0xff] %vm622, %v614
        %vm624 = vcmask 1016680
        %625 = vst.msk [vmem:[#allocation3 + $0x20] sm:$0x1] %vm624, %v616
        %626 = vrot.lane.b32.xlu0 %v522, 15
        %v627 = vpop.permute.xlu0 %626
        %628 = vrot.lane.b32.xlu0 %v524, 15
        %v629 = vpop.permute.xlu0 %628
        %630 = vrot.lane.b32.xlu0 %v523, 15
        %v631 = vpop.permute.xlu0 %630
        %vm635 = vcmask 1048569
        %636 = vst.msk [vmem:[#allocation3] sm:$0xfe] %vm635, %v627
        %vm637 = vcmask 121857
        %638 = vst.msk [vmem:[#allocation3 + $0x8] sm:$0xfe] %vm637, %v627
        %vm639 = vcmask 1048568
        %640 = vst.msk [vmem:[#allocation3 + $0x10] sm:$0xff] %vm639, %v629
        %vm641 = vcmask 121856
        %642 = vst.msk [vmem:[#allocation3 + $0x18] sm:$0xff] %vm641, %v629
        %vm643 = vcmask 1041400
        %644 = vst.msk [vmem:[#allocation3 + $0x20] sm:$0x1] %vm643, %v631
        %vm645 = vcmask 114688
        %646 = vst.msk [vmem:[#allocation3 + $0x28] sm:$0x1] %vm645, %v631
        %v647 = vld [vmem:[#allocation3] sm:$0xff]
        %v648 = vld [vmem:[#allocation3 + $0x8] sm:$0xff]
        %v649 = vld [vmem:[#allocation3 + $0x10] sm:$0xff]
        %v650 = vld [vmem:[#allocation3 + $0x18] sm:$0xff]
        %v651 = vld [vmem:[%s2] sm:$0xff]
        %v652 = vld [vmem:[%s2 + $0x8] sm:$0xff]
        %v653 = vld [vmem:[%s2 + $0x10] sm:$0xff]
        %v654 = vld [vmem:[%s2 + $0x18] sm:$0xff]
        %v655 = vld [vmem:[%s2 + $0x20] sm:$0xff]
        %v656 = vld [vmem:[%s2 + $0x28] sm:$0xff]
        %v657 = vld [vmem:[%s2 + $0x30] sm:$0xff]
        %v658 = vld [vmem:[%s2 + $0x38] sm:$0xff]
        %v659 = vld [vmem:[%s2 + $0x40] sm:$0xff]
        %v660 = vld [vmem:[%s2 + $0x48] sm:$0xff]
        %v661 = vld [vmem:[%s2 + $0x50] sm:$0xff]
        %v662 = vld [vmem:[%s2 + $0x58] sm:$0xff]
        %v663 = vld [vmem:[%s2 + $0x60] sm:$0xff]
        %v664 = vld [vmem:[%s2 + $0x68] sm:$0xff]
        %v665 = vld [vmem:[%s2 + $0x70] sm:$0xff]
        %v666 = vld [vmem:[%s2 + $0x78] sm:$0xff]
        %v667 = vld [vmem:[%s2 + $0x80] sm:$0xff]
        %v668 = vld [vmem:[%s2 + $0x88] sm:$0xff]
        %v669 = vld [vmem:[#allocation3] sm:$0xfe]
        %v670 = vld [vmem:[#allocation3 + $0x8] sm:$0xfe]
        %v671 = vld [vmem:[#allocation3 + $0x20] sm:$0x1]
        %v672 = vld [vmem:[#allocation3 + $0x28] sm:$0x1]
        %s673 = scalar_lea.vmem %s2, 144
        %v674 = vld [vmem:[%s673] sm:$0xff]
        %v675 = vld [vmem:[%s673 + $0x8] sm:$0xff]
        %v676 = vld [vmem:[%s673 + $0x10] sm:$0xff]
        %v677 = vld [vmem:[%s673 + $0x18] sm:$0xff]
        %v678 = vld [vmem:[%s673 + $0x20] sm:$0xff]
        %v679 = vld [vmem:[%s673 + $0x28] sm:$0xff]
        %v680 = vld [vmem:[%s673 + $0x30] sm:$0xff]
        %v681 = vld [vmem:[%s673 + $0x38] sm:$0xff]
        %v682 = vld [vmem:[%s673 + $0x40] sm:$0xff]
        %v683 = vld [vmem:[%s673 + $0x48] sm:$0xff]
        %v684 = vld [vmem:[%s673 + $0x50] sm:$0xff]
        %v685 = vld [vmem:[%s673 + $0x58] sm:$0xff]
        %v686 = vld [vmem:[%s673 + $0x60] sm:$0xff]
        %v687 = vld [vmem:[%s673 + $0x68] sm:$0xff]
        %v688 = vld [vmem:[%s673 + $0x70] sm:$0xff]
        %v689 = vld [vmem:[%s673 + $0x78] sm:$0xff]
        %v690 = vld [vmem:[%s673 + $0x80] sm:$0xff]
        %v691 = vld [vmem:[%s673 + $0x88] sm:$0xff]
        %vm698 = vcmask 1046528
        %v699 = vrot.slane %v669, 1
        %v700 = vrot.slane %v649, 1
        %v701 = vsel %vm698, %v699, %v700
        %v702 = vrot.slane %v670, 1
        %v703 = vrot.slane %v650, 1
        %v704 = vsel %vm698, %v702, %v703
        %v705 = vrot.slane %v671, 1
        %v706 = vsel %vm698, %v700, %v705
        %v707 = vrot.slane %v672, 1
        %v708 = vsel %vm698, %v703, %v707
        %v711 = vsel %vm512, %v704, 0
        %v713 = vsel %vm512, %v708, 0
        %715 = vmatprep.subr.mxu0 0.0
        %716 = vmatpush1.msra.mxu0 %v689
        %717 = vmatprep.subr.mxu0 0.0
        %718 = vmatpush1.msra.mxu0 %v688
        %719 = vmatprep.subr.mxu0 0.0
        %720 = vmatpush1.msra.mxu0 %v687
        %721 = vmatprep.subr.mxu0 0.0
        %722 = vmatpush1.msra.mxu0 %v686
        %723 = vmatprep.subr.mxu0 0.0
        %724 = vmatpush1.msra.mxu0 %v685
        %725 = vmatprep.subr.mxu0 0.0
        %726 = vmatpush1.msra.mxu0 %v684
        %727 = vmatprep.subr.mxu0 0.0
        %728 = vmatpush1.msra.mxu0 %v683
        %729 = vmatprep.subr.mxu0 0.0
        %730 = vmatpush1.msra.mxu0 %v682
        %731 = vmatprep.subr.mxu0 0.0
        %732 = vmatpush1.msra.mxu0 %v681
        %733 = vmatprep.subr.mxu0 0.0
        %734 = vmatpush1.msra.mxu0 %v680
        %735 = vmatprep.subr.mxu0 0.0
        %736 = vmatpush1.msra.mxu0 %v679
        %737 = vmatprep.subr.mxu0 0.0
        %738 = vmatpush1.msra.mxu0 %v678
        %739 = vmatprep.subr.mxu0 0.0
        %740 = vmatpush1.msra.mxu0 %v677
        %741 = vmatprep.subr.mxu0 0.0
        %742 = vmatpush1.msra.mxu0 %v676
        %743 = vmatprep.subr.mxu0 0.0
        %744 = vmatpush1.msra.mxu0 %v675
        %745 = vmatprep.subr.mxu0 0.0
        %746 = vmatpush1.msra.mxu0 %v674
        %747 = vmatprep.subr.mxu0 0.0
        %748 = vmatpush2.msra.mxu0 0.0
        %749 = vmatprep.subr.mxu0 0.0
        %750 = vmatpush2.msra.mxu0 0.0
        %751 = vmatprep.subr.mxu0 0.0
        %752 = vmatpush2.msra.mxu0 0.0
        %753 = vmatprep.subr.mxu0 0.0
        %754 = vmatpush2.msra.mxu0 0.0
        %755 = vmatprep.subr.mxu0 0.0
        %756 = vmatpush2.msra.mxu0 0.0
        %757 = vmatprep.subr.mxu0 0.0
        %758 = vmatpush2.msra.mxu0 0.0
        %759 = vmatprep.subr.mxu0 0.0
        %760 = vmatpush2.msra.mxu0 0.0
        %761 = vmatprep.subr.mxu0 0.0
        %762 = vmatpush2.msra.mxu0 0.0
        %763 = vmatprep.subr.mxu0 0.0
        %764 = vmatpush2.msra.mxu0 0.0
        %765 = vmatprep.subr.mxu0 0.0
        %766 = vmatpush2.msra.mxu0 0.0
        %767 = vmatprep.subr.mxu0 0.0
        %768 = vmatpush2.msra.mxu0 0.0
        %769 = vmatprep.subr.mxu0 0.0
        %770 = vmatpush2.msra.mxu0 0.0
        %771 = vmatprep.subr.mxu0 0.0
        %772 = vmatpush2.msra.mxu0 0.0
        %773 = vmatprep.subr.mxu0 0.0
        %774 = vmatpush2.msra.mxu0 0.0
        %775 = vmatprep.subr.mxu0 0.0
        %776 = vmatpush2.msra.mxu0 %v691
        %777 = vmatprep.subr.mxu0 0.0
        %778 = vmatpush2.msra.mxu0 %v690
        %779 = vmatprep.mubr.f32.mxu0 %v711
        %780 = vmatmul.mubr.f32.gmra.mxu0 %v701
        %v781 = vpop.f32.mrf.mxu0
        %v782 = vadd.f32 0.0, %v781
        %v783 = vpop.f32.mrf.mxu0
        %784 = vmatprep.mubr.f32.mxu0 %v713
        %785 = vmatmul.mubr.f32.gmra.mxu0 %v706
        %v786 = vpop.f32.mrf.mxu0
        %v787 = vadd.f32 0.0, %v786
        %v788 = vpop.f32.mrf.mxu0
        %789 = vdwg.mxu0
        %v791 = vsel %vm512, %v648, 0
        %v793 = vsel %vm512, %v650, 0
        %795 = vmatprep.subr.mxu0 0.0
        %796 = vmatpush1.msra.mxu0 %v666
        %797 = vmatprep.subr.mxu0 0.0
        %798 = vmatpush1.msra.mxu0 %v665
        %799 = vmatprep.subr.mxu0 0.0
        %800 = vmatpush1.msra.mxu0 %v664
        %801 = vmatprep.subr.mxu0 0.0
        %802 = vmatpush1.msra.mxu0 %v663
        %803 = vmatprep.subr.mxu0 0.0
        %804 = vmatpush1.msra.mxu0 %v662
        %805 = vmatprep.subr.mxu0 0.0
        %806 = vmatpush1.msra.mxu0 %v661
        %807 = vmatprep.subr.mxu0 0.0
        %808 = vmatpush1.msra.mxu0 %v660
        %809 = vmatprep.subr.mxu0 0.0
        %810 = vmatpush1.msra.mxu0 %v659
        %811 = vmatprep.subr.mxu0 0.0
        %812 = vmatpush1.msra.mxu0 %v658
        %813 = vmatprep.subr.mxu0 0.0
        %814 = vmatpush1.msra.mxu0 %v657
        %815 = vmatprep.subr.mxu0 0.0
        %816 = vmatpush1.msra.mxu0 %v656
        %817 = vmatprep.subr.mxu0 0.0
        %818 = vmatpush1.msra.mxu0 %v655
        %819 = vmatprep.subr.mxu0 0.0
        %820 = vmatpush1.msra.mxu0 %v654
        %821 = vmatprep.subr.mxu0 0.0
        %822 = vmatpush1.msra.mxu0 %v653
        %823 = vmatprep.subr.mxu0 0.0
        %824 = vmatpush1.msra.mxu0 %v652
        %825 = vmatprep.subr.mxu0 0.0
        %826 = vmatpush1.msra.mxu0 %v651
        %827 = vmatprep.subr.mxu0 0.0
        %828 = vmatpush2.msra.mxu0 0.0
        %829 = vmatprep.subr.mxu0 0.0
        %830 = vmatpush2.msra.mxu0 0.0
        %831 = vmatprep.subr.mxu0 0.0
        %832 = vmatpush2.msra.mxu0 0.0
        %833 = vmatprep.subr.mxu0 0.0
        %834 = vmatpush2.msra.mxu0 0.0
        %835 = vmatprep.subr.mxu0 0.0
        %836 = vmatpush2.msra.mxu0 0.0
        %837 = vmatprep.subr.mxu0 0.0
        %838 = vmatpush2.msra.mxu0 0.0
        %839 = vmatprep.subr.mxu0 0.0
        %840 = vmatpush2.msra.mxu0 0.0
        %841 = vmatprep.subr.mxu0 0.0
        %842 = vmatpush2.msra.mxu0 0.0
        %843 = vmatprep.subr.mxu0 0.0
        %844 = vmatpush2.msra.mxu0 0.0
        %845 = vmatprep.subr.mxu0 0.0
        %846 = vmatpush2.msra.mxu0 0.0
        %847 = vmatprep.subr.mxu0 0.0
        %848 = vmatpush2.msra.mxu0 0.0
        %849 = vmatprep.subr.mxu0 0.0
        %850 = vmatpush2.msra.mxu0 0.0
        %851 = vmatprep.subr.mxu0 0.0
        %852 = vmatpush2.msra.mxu0 0.0
        %853 = vmatprep.subr.mxu0 0.0
        %854 = vmatpush2.msra.mxu0 0.0
        %855 = vmatprep.subr.mxu0 0.0
        %856 = vmatpush2.msra.mxu0 %v668
        %857 = vmatprep.subr.mxu0 0.0
        %858 = vmatpush2.msra.mxu0 %v667
        %859 = vmatprep.mubr.f32.mxu0 %v791
        %860 = vmatmul.mubr.f32.gmra.mxu0 %v647
        %v861 = vpop.f32.mrf.mxu0
        %v862 = vadd.f32 %v782, %v861
        %v863 = vpop.f32.mrf.mxu0
        %864 = vmatprep.mubr.f32.mxu0 %v793
        %865 = vmatmul.mubr.f32.gmra.mxu0 %v649
        %v866 = vpop.f32.mrf.mxu0
        %v867 = vadd.f32 %v787, %v866
        %v868 = vpop.f32.mrf.mxu0
        %869 = vdwg.mxu0
        %v870 = vld [vmem:[#allocation3] sm:$0xfc]
        %v871 = vld [vmem:[#allocation3 + $0x8] sm:$0xfc]
        %v872 = vld [vmem:[#allocation3 + $0x20] sm:$0x3]
        %v873 = vld [vmem:[#allocation3 + $0x28] sm:$0x3]
        %s874 = scalar_lea.vmem %s2, 288
        %v875 = vld [vmem:[%s874] sm:$0xff]
        %v876 = vld [vmem:[%s874 + $0x8] sm:$0xff]
        %v877 = vld [vmem:[%s874 + $0x10] sm:$0xff]
        %v878 = vld [vmem:[%s874 + $0x18] sm:$0xff]
        %v879 = vld [vmem:[%s874 + $0x20] sm:$0xff]
        %v880 = vld [vmem:[%s874 + $0x28] sm:$0xff]
        %v881 = vld [vmem:[%s874 + $0x30] sm:$0xff]
        %v882 = vld [vmem:[%s874 + $0x38] sm:$0xff]
        %v883 = vld [vmem:[%s874 + $0x40] sm:$0xff]
        %v884 = vld [vmem:[%s874 + $0x48] sm:$0xff]
        %v885 = vld [vmem:[%s874 + $0x50] sm:$0xff]
        %v886 = vld [vmem:[%s874 + $0x58] sm:$0xff]
        %v887 = vld [vmem:[%s874 + $0x60] sm:$0xff]
        %v888 = vld [vmem:[%s874 + $0x68] sm:$0xff]
        %v889 = vld [vmem:[%s874 + $0x70] sm:$0xff]
        %v890 = vld [vmem:[%s874 + $0x78] sm:$0xff]
        %v891 = vld [vmem:[%s874 + $0x80] sm:$0xff]
        %v892 = vld [vmem:[%s874 + $0x88] sm:$0xff]
        %vm897 = vcmask 1045504
        %v898 = vrot.slane %v870, 2
        %v899 = vrot.slane %v649, 2
        %v900 = vsel %vm897, %v898, %v899
        %v901 = vrot.slane %v871, 2
        %v902 = vrot.slane %v650, 2
        %v903 = vsel %vm897, %v901, %v902
        %v904 = vrot.slane %v872, 2
        %v905 = vsel %vm897, %v899, %v904
        %v906 = vrot.slane %v873, 2
        %v907 = vsel %vm897, %v902, %v906
        %v910 = vsel %vm512, %v903, 0
        %v912 = vsel %vm512, %v907, 0
        %914 = vmatprep.subr.mxu0 0.0
        %915 = vmatpush1.msra.mxu0 %v890
        %916 = vmatprep.subr.mxu0 0.0
        %917 = vmatpush1.msra.mxu0 %v889
        %918 = vmatprep.subr.mxu0 0.0
        %919 = vmatpush1.msra.mxu0 %v888
        %920 = vmatprep.subr.mxu0 0.0
        %921 = vmatpush1.msra.mxu0 %v887
        %922 = vmatprep.subr.mxu0 0.0
        %923 = vmatpush1.msra.mxu0 %v886
        %924 = vmatprep.subr.mxu0 0.0
        %925 = vmatpush1.msra.mxu0 %v885
        %926 = vmatprep.subr.mxu0 0.0
        %927 = vmatpush1.msra.mxu0 %v884
        %928 = vmatprep.subr.mxu0 0.0
        %929 = vmatpush1.msra.mxu0 %v883
        %930 = vmatprep.subr.mxu0 0.0
        %931 = vmatpush1.msra.mxu0 %v882
        %932 = vmatprep.subr.mxu0 0.0
        %933 = vmatpush1.msra.mxu0 %v881
        %934 = vmatprep.subr.mxu0 0.0
        %935 = vmatpush1.msra.mxu0 %v880
        %936 = vmatprep.subr.mxu0 0.0
        %937 = vmatpush1.msra.mxu0 %v879
        %938 = vmatprep.subr.mxu0 0.0
        %939 = vmatpush1.msra.mxu0 %v878
        %940 = vmatprep.subr.mxu0 0.0
        %941 = vmatpush1.msra.mxu0 %v877
        %942 = vmatprep.subr.mxu0 0.0
        %943 = vmatpush1.msra.mxu0 %v876
        %944 = vmatprep.subr.mxu0 0.0
        %945 = vmatpush1.msra.mxu0 %v875
        %946 = vmatprep.subr.mxu0 0.0
        %947 = vmatpush2.msra.mxu0 0.0
        %948 = vmatprep.subr.mxu0 0.0
        %949 = vmatpush2.msra.mxu0 0.0
        %950 = vmatprep.subr.mxu0 0.0
        %951 = vmatpush2.msra.mxu0 0.0
        %952 = vmatprep.subr.mxu0 0.0
        %953 = vmatpush2.msra.mxu0 0.0
        %954 = vmatprep.subr.mxu0 0.0
        %955 = vmatpush2.msra.mxu0 0.0
        %956 = vmatprep.subr.mxu0 0.0
        %957 = vmatpush2.msra.mxu0 0.0
        %958 = vmatprep.subr.mxu0 0.0
        %959 = vmatpush2.msra.mxu0 0.0
        %960 = vmatprep.subr.mxu0 0.0
        %961 = vmatpush2.msra.mxu0 0.0
        %962 = vmatprep.subr.mxu0 0.0
        %963 = vmatpush2.msra.mxu0 0.0
        %964 = vmatprep.subr.mxu0 0.0
        %965 = vmatpush2.msra.mxu0 0.0
        %966 = vmatprep.subr.mxu0 0.0
        %967 = vmatpush2.msra.mxu0 0.0
        %968 = vmatprep.subr.mxu0 0.0
        %969 = vmatpush2.msra.mxu0 0.0
        %970 = vmatprep.subr.mxu0 0.0
        %971 = vmatpush2.msra.mxu0 0.0
        %972 = vmatprep.subr.mxu0 0.0
        %973 = vmatpush2.msra.mxu0 0.0
        %974 = vmatprep.subr.mxu0 0.0
        %975 = vmatpush2.msra.mxu0 %v892
        %976 = vmatprep.subr.mxu0 0.0
        %977 = vmatpush2.msra.mxu0 %v891
        %978 = vmatprep.mubr.f32.mxu0 %v910
        %979 = vmatmul.mubr.f32.gmra.mxu0 %v900
        %v980 = vpop.f32.mrf.mxu0
        %v981 = vadd.f32 0.0, %v980
        %v982 = vpop.f32.mrf.mxu0
        %983 = vmatprep.mubr.f32.mxu0 %v912
        %984 = vmatmul.mubr.f32.gmra.mxu0 %v905
        %v985 = vpop.f32.mrf.mxu0
        %v986 = vadd.f32 0.0, %v985
        %v987 = vpop.f32.mrf.mxu0
        %988 = vdwg.mxu0
        %v989 = vadd.f32 %v862, %v981
        %v990 = vadd.f32 %v867, %v986
        %v991 = vmax.f32 %v989, 0.0
        %v992 = vmax.f32 %v990, 0.0
        %993 = vst.msk [vmem:[%s163] sm:$0xff] %vm512, %v991
        %994 = vst.msk [vmem:[%s163 + $0x8] sm:$0xff] %vm512, %v992
        %997 = vrot.lane.b32.xlu0 %v991, 112
        %v998 = vpop.permute.xlu0 %997
        %999 = vrot.lane.b32.xlu0 %v992, 112
        %v1000 = vpop.permute.xlu0 %999
        %s1003 = scalar_lea.vmem %s163, 16 [#allocation4]
        %1004 = vst.msk [vmem:[%s1003] sm:$0xff] %vm512, %v998
        %1005 = vst.msk [vmem:[%s1003 + $0x8] sm:$0xff] %vm512, %v1000
        %1006 = vrot.lane.b32.xlu0 %v991, 96
        %v1007 = vpop.permute.xlu0 %1006
        %1008 = vrot.lane.b32.xlu0 %v992, 96
        %v1009 = vpop.permute.xlu0 %1008
        %s1012 = scalar_lea.vmem %s163, 32 [#allocation4]
        %1013 = vst.msk [vmem:[%s1012] sm:$0xff] %vm512, %v1007
        %1014 = vst.msk [vmem:[%s1012 + $0x8] sm:$0xff] %vm512, %v1009
        %1015 = vrot.lane.b32.xlu0 %v991, 80
        %v1016 = vpop.permute.xlu0 %1015
        %1017 = vrot.lane.b32.xlu0 %v992, 80
        %v1018 = vpop.permute.xlu0 %1017
        %s1021 = scalar_lea.vmem %s163, 48 [#allocation4]
        %1022 = vst.msk [vmem:[%s1021] sm:$0xff] %vm512, %v1016
        %1023 = vst.msk [vmem:[%s1021 + $0x8] sm:$0xff] %vm512, %v1018
        %1024 = vrot.lane.b32.xlu0 %v991, 64
        %v1025 = vpop.permute.xlu0 %1024
        %1026 = vrot.lane.b32.xlu0 %v992, 64
        %v1027 = vpop.permute.xlu0 %1026
        %s1030 = scalar_lea.vmem %s163, 64 [#allocation4]
        %1031 = vst.msk [vmem:[%s1030] sm:$0xff] %vm512, %v1025
        %1032 = vst.msk [vmem:[%s1030 + $0x8] sm:$0xff] %vm512, %v1027
        %1033 = vrot.lane.b32.xlu0 %v991, 48
        %v1034 = vpop.permute.xlu0 %1033
        %1035 = vrot.lane.b32.xlu0 %v992, 48
        %v1036 = vpop.permute.xlu0 %1035
        %s1039 = scalar_lea.vmem %s163, 80 [#allocation4]
        %1040 = vst.msk [vmem:[%s1039] sm:$0xff] %vm512, %v1034
        %1041 = vst.msk [vmem:[%s1039 + $0x8] sm:$0xff] %vm512, %v1036
        %1042 = vrot.lane.b32.xlu0 %v991, 32
        %v1043 = vpop.permute.xlu0 %1042
        %1044 = vrot.lane.b32.xlu0 %v992, 32
        %v1045 = vpop.permute.xlu0 %1044
        %s1048 = scalar_lea.vmem %s163, 96 [#allocation4]
        %1049 = vst.msk [vmem:[%s1048] sm:$0xff] %vm512, %v1043
        %1050 = vst.msk [vmem:[%s1048 + $0x8] sm:$0xff] %vm512, %v1045
        %1051 = vrot.lane.b32.xlu0 %v991, 16
        %v1052 = vpop.permute.xlu0 %1051
        %1053 = vrot.lane.b32.xlu0 %v992, 16
        %v1054 = vpop.permute.xlu0 %1053
        %s1057 = scalar_lea.vmem %s163, 112 [#allocation4]
        %1058 = vst.msk [vmem:[%s1057] sm:$0xff] %vm512, %v1052
        %1059 = vst.msk [vmem:[%s1057 + $0x8] sm:$0xff] %vm512, %v1054
        %s1060 = sand.u32 %s93, 1
        %s1061 = scalar_lea.sflag [#allocation5], %s1060
        %s1062 = sand.u32 %s93, 1
        %s1063 = smul.addr %s1062, 128
        %s1064 = scalar_lea.vmem [#allocation4], %s1063
        // Predicated region
        $region33: #{double_conv.1} parent=31 // pred_check
          %p1065 = pneg %p103
        $region34: #{double_conv.1} parent=31 // pred_check_branch
          %1067 = sbr.rel (%p1065) target = $region36
        $region35: #{double_conv.1} parent=31 // pred_region
          %s1069 = ssub.s32 2048, 2048
          %1070 = vsyncadd %s1061, %s1069
          %s1071 = smul.addr %s17, 16
          %s1072 = smul.addr %s1071, 128
          %s1073 = scalar_lea.hbm %s3, %s1072
          %s1074 = sshll.u32 %s1064, 4
          %s1075 = int_to_ptr.vmem [resolvable:$true] %s1074
          %1080 = dma.vmem_to_hbm [thread:$0]  %s1075, 2048, %s1073, %s1061, 128, 128, 8
        $region36: #{double_conv.1} parent=31 // pred_fallthru
          _
      $region32: #{double_conv.1} parent=5 // pred_fallthru
        _
      %p1081 = scmp.le.s32.totalorder 2, %s12
      // Predicated region
      $region37: #{double_conv.1} parent=5 // pred_check
        %p1082 = pneg %p1081
      $region38: #{double_conv.1} parent=5 // pred_check_branch
        %1084 = sbr.rel (%p1082) target = $region40
      $region39: #{double_conv.1} parent=5 // pred_region
        %s1085 = ssub.s32 %s12, 2
        // Predicated region
        $region41: #{double_conv.1} parent=39 // pred_check
          %p1086 = pneg %p109
        $region42: #{double_conv.1} parent=39 // pred_check_branch
          %1088 = sbr.rel (%p1086) target = $region44
        $region43: #{double_conv.1} parent=39 // pred_region
          %s1089 = sand.u32 %s94, 1
          %s1090 = scalar_lea.sflag [#allocation5], %s1089
          %s1091 = sand.u32 %s94, 1
          %s1092 = smul.addr %s1091, 128
          %s1093 = scalar_lea.vmem [#allocation4], %s1092
          %1094 = dma.done %s1090, 2048
        $region44: #{double_conv.1} parent=39 // pred_fallthru
          _
      $region40: #{double_conv.1} parent=5 // pred_fallthru
        _
    $region6: #{double_conv.1} parent=1 // loop_footer
      %s16 = sadd.s32 1, %s12
    $region7: #{double_conv.1} parent=1 // loop_footer_branch
      %11 = sbr.rel target = $region3
    $region8: #{double_conv.1} parent=1 // loop_exit
      _
    %1095 = vsyncpa [#allocation5], 1
    %s1096 = scalar_lea.sflag [#allocation5], 1
    %1097 = vsyncpa %s1096, 1

</llo_original>
